<compile_context>
chip_gen: v5e
topology: v5e:2x2
jax: 0.10.0
libtpu: 0.0.40
codegen_flags: <defaults>
</compile_context>

<pallas_src>
import math

import numpy as np

import jax
import jax.numpy as jnp
from jax.experimental import pallas as pl
from jax.experimental.pallas import tpu as pltpu


def _round_up(v, m):
    return (v + m - 1) // m * m


# ---------------------------------------------------------------------------
# Kernel
# ---------------------------------------------------------------------------
def _stacked_gru_kernel(x_ref, h_ref, wi_ref, wh_ref, bi_ref, bh_ref,
                        hs_ref, carry_ref):
    layer = pl.program_id(1)
    hp = hs_ref.shape[-1]                       # padded hidden width (multiple of 128)

    # Layer 0 of each batch tile consumes the external input; later layers consume
    # the previous layer's activation carried in VMEM (no HBM trip between layers).
    @pl.when(layer == 0)
    def _():
        carry_ref[...] = x_ref[...].astype(carry_ref.dtype)

    x = carry_ref[...]                          # (tb, Imax) compute dtype (f32 or bf16)
    h32 = h_ref[0].astype(jnp.float32)          # (tb, Hp) f32 for the epilogue
    h = h_ref[0].astype(x.dtype)                # matmul operand in compute dtype

    # Two packed matmuls (N = 3*Hp) instead of six per-gate matmuls.  bf16 operands
    # feed the MXU natively; accumulation is f32 via preferred_element_type.
    # (For strict fp32 parity with PyTorch, precision=jax.lax.Precision.HIGHEST
    #  would be needed at ~3x matmul cost.)
    gi = jnp.dot(x, wi_ref[0], preferred_element_type=jnp.float32) + bi_ref[0]
    gh = jnp.dot(h, wh_ref[0], preferred_element_type=jnp.float32) + bh_ref[0]

    # Static, lane-aligned gate slices (Hp is a multiple of 128).
    r = jax.nn.sigmoid(gi[:, 0 * hp:1 * hp] + gh[:, 0 * hp:1 * hp])
    z = jax.nn.sigmoid(gi[:, 1 * hp:2 * hp] + gh[:, 1 * hp:2 * hp])
    n = jnp.tanh(gi[:, 2 * hp:3 * hp] + r * gh[:, 2 * hp:3 * hp])
    h_new = (1.0 - z) * n + z * h32             # (tb, Hp) f32

    hs_ref[...] = h_new[None].astype(hs_ref.dtype)

    # Carry to the next layer (lane-aligned slice store).  When Imax > Hp the tail
    # columns [Hp:Imax] keep stale layer-0 data, which is harmless because
    # pack_params zero-pads the corresponding Wi rows for layers > 0.
    # TODO(synk): training-mode nn.Dropout between layers is not implemented
    # (eval-mode identity; PyTorch's dropout RNG cannot be matched anyway).
    if carry_ref.shape[1] == hp:
        carry_ref[...] = h_new.astype(carry_ref.dtype)
    else:
        carry_ref[:, :hp] = h_new.astype(carry_ref.dtype)


# ---------------------------------------------------------------------------
# Wrapper
# ---------------------------------------------------------------------------
def _pick_batch_tile(batch, per_row_bytes, weight_bytes):
    """Largest legal batch tile whose VMEM footprint (with double-buffered
    weights) stays inside a budget that is safe on v5e / v6e / v7x (64 MiB)."""
    budget = 48 * 2**20
    avail = max(budget - weight_bytes, 4 * 2**20)
    if batch % 8 != 0:
        return batch                          # full-array block is always legal
    cands = sorted({t for t in (batch, 4096, 2048, 1024, 512, 256, 128, 64, 32, 16, 8)
                    if t <= batch and batch % t == 0}, reverse=True)
    for t in cands:
        if t * per_row_bytes <= avail:
            return t
    return cands[-1]


def stacked_gru_cell(x, hidden, wi, wh, bi, bh):
    """x: (B, I); hidden: (L, B, H);
    wi: (L, Imax_pad, 3*Hpad); wh: (L, Hpad, 3*Hpad); bi, bh: (L, 1, 3*Hpad)
    (as produced by pack_params).  Returns (output (B, H), hs (L, B, H))."""
    batch, in_size = x.shape
    num_layers, batch_h, h = hidden.shape
    assert batch_h == batch
    assert wi.shape[0] == num_layers
    imax_p = wi.shape[1]
    hp = wi.shape[2] // 3
    assert wh.shape == (num_layers, hp, 3 * hp)
    assert hp >= h and imax_p >= in_size

    # Pad activations to the packed, lane-dense widths.
    if in_size < imax_p:
        x = jnp.pad(x, ((0, 0), (0, imax_p - in_size)))
    hidden_p = hidden if hp == h else jnp.pad(hidden, ((0, 0), (0, 0), (0, hp - h)))

    wdt = wi.dtype.itemsize                   # weight / compute-carry dtype bytes
    xdt = x.dtype.itemsize
    hdt = hidden.dtype.itemsize

    # Double-buffered weight + bias tiles (independent of the batch tile size).
    weight_bytes = 2 * ((imax_p * 3 * hp + hp * 3 * hp) * wdt + 2 * 3 * hp * 4)
    # Per batch-row VMEM cost: x, hidden, hs (double-buffered) + carry scratch.
    per_row = 2 * imax_p * xdt + 2 * hp * hdt + 2 * hp * hdt + imax_p * wdt

    tb = _pick_batch_tile(batch, per_row, weight_bytes)
    n_b = batch // tb
    # TODO(synk): when n_b > 1 the per-layer weights are re-streamed from HBM once
    # per batch tile; a layer-outer grid with the carry bounced through HBM would
    # avoid that at the cost of the VMEM-resident carry.
    # TODO(synk): on v7x with n_b == 1 only one TensorCore is used; splitting the
    # packed 3H gate columns across the two cores would roughly double weight BW.

    vmem_limit = int(min(64 * 2**20,
                         max(32 * 2**20, 2 * (weight_bytes + tb * per_row))))

    cost = pl.CostEstimate(
        flops=int(2 * batch * (imax_p + hp) * 3 * hp * num_layers),
        transcendentals=int(3 * batch * hp * num_layers),
        bytes_accessed=int(n_b * ((wi.size + wh.size) * wdt + (bi.size + bh.size) * 4)
                           + x.size * xdt + hidden_p.size * hdt
                           + num_layers * batch * hp * hdt),
    )

    hs = pl.pallas_call(
        _stacked_gru_kernel,
        out_shape=jax.ShapeDtypeStruct((num_layers, batch, hp), hidden.dtype),
        grid_spec=pltpu.PrefetchScalarGridSpec(
            num_scalar_prefetch=0,
            grid=(n_b, num_layers),
            in_specs=[
                pl.BlockSpec((tb, imax_p), lambda b, l: (b, 0)),              # x
                pl.BlockSpec((1, tb, hp), lambda b, l: (l, b, 0)),            # hidden[l]
                pl.BlockSpec((1, imax_p, 3 * hp), lambda b, l: (l, 0, 0)),    # Wi packed
                pl.BlockSpec((1, hp, 3 * hp), lambda b, l: (l, 0, 0)),        # Wh packed
                pl.BlockSpec((1, 1, 3 * hp), lambda b, l: (l, 0, 0)),         # bias (input side, r/z folded)
                pl.BlockSpec((1, 1, 3 * hp), lambda b, l: (l, 0, 0)),         # bias (hidden side, n only)
            ],
            out_specs=pl.BlockSpec((1, tb, hp), lambda b, l: (l, b, 0)),
            scratch_shapes=[pltpu.VMEM((tb, imax_p), wi.dtype)],              # inter-layer carry
        ),
        compiler_params=pltpu.CompilerParams(
            dimension_semantics=("parallel", "arbitrary"),
            vmem_limit_bytes=vmem_limit,
        ),
        cost_estimate=cost,
    )(x, hidden_p, wi, wh, bi, bh)

    if hp != h:
        hs = hs[..., :h]
    # Module returns (dropout(h_last), stack(h_l)); dropout is identity in eval mode.
    return hs[-1], hs


# ---------------------------------------------------------------------------
# Parameter helpers (PyTorch GRUCell layout -> packed lane-dense Pallas layout)
# ---------------------------------------------------------------------------
def init_params(key, num_layers, input_size, rnn_size, dtype=jnp.float32):
    params = []
    bound = 1.0 / math.sqrt(rnn_size)
    in_sz = input_size
    for i in range(num_layers):
        k1, k2, k3, k4 = jax.random.split(jax.random.fold_in(key, i), 4)
        params.append((
            jax.random.uniform(k1, (3 * rnn_size, in_sz), dtype, -bound, bound),     # weight_ih
            jax.random.uniform(k2, (3 * rnn_size, rnn_size), dtype, -bound, bound),  # weight_hh
            jax.random.uniform(k3, (3 * rnn_size,), dtype, -bound, bound),           # bias_ih
            jax.random.uniform(k4, (3 * rnn_size,), dtype, -bound, bound),           # bias_hh
        ))
        in_sz = rnn_size
    return params


def pack_params(params, input_size, rnn_size, weight_dtype=jnp.bfloat16):
    """Pack PyTorch-layout GRUCell params into lane-dense blocks:
       Wi: (L, Imax_pad, 3*Hpad), Wh: (L, Hpad, 3*Hpad), biases: (L, 1, 3*Hpad) f32.
    Invariant: Wi rows >= in_sz are zero for every layer (layers > 0 have
    in_sz == rnn_size), which the kernel's carry slice-store relies on."""
    num_layers = len(params)
    h = rnn_size
    hp = _round_up(rnn_size, 128)
    imax_p = _round_up(max(input_size, hp), 128)

    wi = np.zeros((num_layers, imax_p, 3 * hp), np.float32)
    wh = np.zeros((num_layers, hp, 3 * hp), np.float32)
    bi = np.zeros((num_layers, 1, 3 * hp), np.float32)
    bh = np.zeros((num_layers, 1, 3 * hp), np.float32)

    for l, (w_ih, w_hh, b_ih, b_hh) in enumerate(params):
        w_ih = np.asarray(w_ih, np.float32)
        w_hh = np.asarray(w_hh, np.float32)
        b_ih = np.asarray(b_ih, np.float32)
        b_hh = np.asarray(b_hh, np.float32)
        in_sz = w_ih.shape[1]
        for g in range(3):                                   # PyTorch gate order: r, z, n
            wi[l, :in_sz, g * hp:g * hp + h] = w_ih[g * h:(g + 1) * h, :].T
            wh[l, :h,     g * hp:g * hp + h] = w_hh[g * h:(g + 1) * h, :].T
        # Fold b_ih + b_hh for the r/z gates into the input-side bias; keep the
        # n-gate hidden bias separate because r multiplies (h @ W_hn + b_hn).
        bi[l, 0, 0 * hp:0 * hp + h] = b_ih[0 * h:1 * h] + b_hh[0 * h:1 * h]
        bi[l, 0, 1 * hp:1 * hp + h] = b_ih[1 * h:2 * h] + b_hh[1 * h:2 * h]
        bi[l, 0, 2 * hp:2 * hp + h] = b_ih[2 * h:3 * h]
        bh[l, 0, 2 * hp:2 * hp + h] = b_hh[2 * h:3 * h]

    return (jnp.asarray(wi, weight_dtype), jnp.asarray(wh, weight_dtype),
            jnp.asarray(bi, jnp.float32), jnp.asarray(bh, jnp.float32))


# ---------------------------------------------------------------------------
# Pure-JAX reference (eval-mode StackedGRUCell)
# ---------------------------------------------------------------------------
def _gru_cell_ref(x, h, w_ih, w_hh, b_ih, b_hh):
    hid = h.shape[-1]
    gi = x @ w_ih.T + b_ih
    gh = h @ w_hh.T + b_hh
    r = jax.nn.sigmoid(gi[:, :hid] + gh[:, :hid])
    z = jax.nn.sigmoid(gi[:, hid:2 * hid] + gh[:, hid:2 * hid])
    n = jnp.tanh(gi[:, 2 * hid:] + r * gh[:, 2 * hid:])
    return (1.0 - z) * n + z * h


def stacked_gru_cell_ref(x, hidden, params):
    hs = []
    inp = x
    for i, p in enumerate(params):
        h_i = _gru_cell_ref(inp, hidden[i], *p)
        inp = h_i  # dropout == identity in eval mode
        hs.append(h_i)
    return inp, jnp.stack(hs)


# ---------------------------------------------------------------------------
if __name__ == "__main__":
    key = jax.random.PRNGKey(0)
    num_layers, batch, input_size, rnn_size = 2, 2, 32, 32

    kx, kh, kp = jax.random.split(key, 3)
    x = jax.random.normal(kx, (batch, input_size), jnp.float32)
    hidden = jax.random.normal(kh, (num_layers, batch, rnn_size), jnp.float32)
    params = init_params(kp, num_layers, input_size, rnn_size)

    ref_out, ref_hs = stacked_gru_cell_ref(x, hidden, params)

    # --- f32-weight path: tight parity with the PyTorch fp32 math. ---
    wi32, wh32, bi32, bh32 = pack_params(params, input_size, rnn_size,
                                         weight_dtype=jnp.float32)
    out32, hs32 = stacked_gru_cell(x, hidden, wi32, wh32, bi32, bh32)
    out32, hs32 = jax.block_until_ready((out32, hs32))
    assert out32.shape == (batch, rnn_size)
    assert hs32.shape == (num_layers, batch, rnn_size)
    # Tolerance covers MXU default-precision f32 matmul differences vs XLA.
    assert jnp.allclose(hs32, ref_hs, atol=5e-3, rtol=5e-3)
    assert jnp.allclose(out32, ref_out, atol=5e-3, rtol=5e-3)

    # --- bf16-weight path: recommended perf config (halves weight HBM traffic),
    #     f32 accumulation + f32 epilogue; looser tolerance for bf16 rounding. ---
    wi16, wh16, bi16, bh16 = pack_params(params, input_size, rnn_size,
                                         weight_dtype=jnp.bfloat16)
    out16, hs16 = stacked_gru_cell(x, hidden, wi16, wh16, bi16, bh16)
    out16, hs16 = jax.block_until_ready((out16, hs16))
    assert jnp.allclose(hs16, ref_hs, atol=2e-2, rtol=2e-2)
    assert jnp.allclose(out16, ref_out, atol=2e-2, rtol=2e-2)

    print("KERNEL_OK")
</pallas_src>

<mosaic_0001>
module attributes {stable_mosaic.version = 11 : i64} {
  func.func @_stacked_gru_kernel(%arg0: i32, %arg1: i32, %arg2: memref<2x128xf32, #tpu.memory_space<vmem>>, %arg3: memref<1x2x128xf32, #tpu.memory_space<vmem>>, %arg4: memref<1x128x384xf32, #tpu.memory_space<vmem>>, %arg5: memref<1x128x384xf32, #tpu.memory_space<vmem>>, %arg6: memref<1x1x384xf32, #tpu.memory_space<vmem>>, %arg7: memref<1x1x384xf32, #tpu.memory_space<vmem>>, %arg8: memref<1x2x128xf32, #tpu.memory_space<vmem>>, %arg9: memref<2x128xf32, #tpu.memory_space<vmem>>) attributes {dimension_semantics = [#tpu.dimension_semantics<parallel>, #tpu.dimension_semantics<arbitrary>], iteration_bounds = array<i64: 1, 2>, scalar_prefetch = 0 : i64, scratch_operands = 1 : i64, tpu.core_type = #tpu.core_type<tc>, window_params = [{transform_indices = @transform_0, window_bounds = array<i64: 2, 128>}, {transform_indices = @transform_1, window_bounds = array<i64: 1, 2, 128>}, {transform_indices = @transform_2, window_bounds = array<i64: 1, 128, 384>}, {transform_indices = @transform_3, window_bounds = array<i64: 1, 128, 384>}, {transform_indices = @transform_4, window_bounds = array<i64: 1, 1, 384>}, {transform_indices = @transform_5, window_bounds = array<i64: 1, 1, 384>}, {transform_indices = @transform_6, window_bounds = array<i64: 1, 2, 128>}]} {
    %c0_i32 = arith.constant 0 : i32
    %0 = arith.cmpi eq, %arg1, %c0_i32 : i32
    %1 = arith.extui %0 : i1 to i32
    %c0_i32_0 = arith.constant 0 : i32
    %2 = arith.cmpi ne, %1, %c0_i32_0 : i32
    scf.if %2 {
      %c0_29 = arith.constant 0 : index
      %c0_30 = arith.constant 0 : index
      %51 = vector.load %arg2[%c0_29, %c0_30] : memref<2x128xf32, #tpu.memory_space<vmem>>, vector<2x128xf32>
      %c0_31 = arith.constant 0 : index
      %c0_32 = arith.constant 0 : index
      %52 = vector.load %arg9[%c0_31, %c0_32] : memref<2x128xf32, #tpu.memory_space<vmem>>, vector<2x128xf32>
      tpu.vector_store %arg9[%c0_31, %c0_32], %51 {strides = array<i32>} : memref<2x128xf32, #tpu.memory_space<vmem>>, vector<2x128xf32>,
    } else {
    }
    %c0 = arith.constant 0 : index
    %c0_1 = arith.constant 0 : index
    %3 = vector.load %arg9[%c0, %c0_1] : memref<2x128xf32, #tpu.memory_space<vmem>>, vector<2x128xf32>
    %c0_2 = arith.constant 0 : index
    %c0_3 = arith.constant 0 : index
    %c0_4 = arith.constant 0 : index
    %4 = vector.load %arg3[%c0_2, %c0_3, %c0_4] : memref<1x2x128xf32, #tpu.memory_space<vmem>>, vector<1x2x128xf32>
    %5 = vector.shape_cast %4 : vector<1x2x128xf32> to vector<2x128xf32>
    %c0_5 = arith.constant 0 : index
    %c0_6 = arith.constant 0 : index
    %c0_7 = arith.constant 0 : index
    %6 = vector.load %arg3[%c0_5, %c0_6, %c0_7] : memref<1x2x128xf32, #tpu.memory_space<vmem>>, vector<1x2x128xf32>
    %7 = vector.shape_cast %6 : vector<1x2x128xf32> to vector<2x128xf32>
    %c0_8 = arith.constant 0 : index
    %c0_9 = arith.constant 0 : index
    %c0_10 = arith.constant 0 : index
    %8 = vector.load %arg4[%c0_8, %c0_9, %c0_10] : memref<1x128x384xf32, #tpu.memory_space<vmem>>, vector<1x128x384xf32>
    %9 = vector.shape_cast %8 : vector<1x128x384xf32> to vector<128x384xf32>
    %cst = arith.constant dense<0.000000e+00> : vector<2x384xf32>
    %10 = tpu.matmul %3, %9, %cst {dimension_numbers = #tpu.dot_dimension_numbers<[1], [0], [0], [1], [0, 0, 1, 1], [], []>} : vector<2x128xf32>, vector<128x384xf32>, vector<2x384xf32> -> vector<2x384xf32>
    %c0_11 = arith.constant 0 : index
    %c0_12 = arith.constant 0 : index
    %c0_13 = arith.constant 0 : index
    %11 = vector.load %arg6[%c0_11, %c0_12, %c0_13] : memref<1x1x384xf32, #tpu.memory_space<vmem>>, vector<1x1x384xf32>
    %12 = vector.shape_cast %11 : vector<1x1x384xf32> to vector<1x384xf32>
    %13 = vector.broadcast %12 : vector<1x384xf32> to vector<2x384xf32>
    %14 = arith.addf %10, %13 : vector<2x384xf32>
    %c0_14 = arith.constant 0 : index
    %c0_15 = arith.constant 0 : index
    %c0_16 = arith.constant 0 : index
    %15 = vector.load %arg5[%c0_14, %c0_15, %c0_16] : memref<1x128x384xf32, #tpu.memory_space<vmem>>, vector<1x128x384xf32>
    %16 = vector.shape_cast %15 : vector<1x128x384xf32> to vector<128x384xf32>
    %cst_17 = arith.constant dense<0.000000e+00> : vector<2x384xf32>
    %17 = tpu.matmul %7, %16, %cst_17 {dimension_numbers = #tpu.dot_dimension_numbers<[1], [0], [0], [1], [0, 0, 1, 1], [], []>} : vector<2x128xf32>, vector<128x384xf32>, vector<2x384xf32> -> vector<2x384xf32>
    %c0_18 = arith.constant 0 : index
    %c0_19 = arith.constant 0 : index
    %c0_20 = arith.constant 0 : index
    %18 = vector.load %arg7[%c0_18, %c0_19, %c0_20] : memref<1x1x384xf32, #tpu.memory_space<vmem>>, vector<1x1x384xf32>
    %19 = vector.shape_cast %18 : vector<1x1x384xf32> to vector<1x384xf32>
    %20 = vector.broadcast %19 : vector<1x384xf32> to vector<2x384xf32>
    %21 = arith.addf %17, %20 : vector<2x384xf32>
    %22 = vector.extract_strided_slice %14 {offsets = [0, 0], sizes = [2, 128], strides = [1, 1]} : vector<2x384xf32> to vector<2x128xf32>
    %23 = vector.extract_strided_slice %21 {offsets = [0, 0], sizes = [2, 128], strides = [1, 1]} : vector<2x384xf32> to vector<2x128xf32>
    %24 = arith.addf %22, %23 : vector<2x128xf32>
    %25 = arith.negf %24 : vector<2x128xf32>
    %26 = math.exp %25 : vector<2x128xf32>
    %cst_21 = arith.constant 1.000000e+00 : f32
    %27 = vector.broadcast %cst_21 : f32 to vector<2x128xf32>
    %28 = arith.addf %27, %26 : vector<2x128xf32>
    %29 = arith.divf %27, %28 : vector<2x128xf32>
    %30 = vector.extract_strided_slice %14 {offsets = [0, 128], sizes = [2, 128], strides = [1, 1]} : vector<2x384xf32> to vector<2x128xf32>
    %31 = vector.extract_strided_slice %21 {offsets = [0, 128], sizes = [2, 128], strides = [1, 1]} : vector<2x384xf32> to vector<2x128xf32>
    %32 = arith.addf %30, %31 : vector<2x128xf32>
    %33 = arith.negf %32 : vector<2x128xf32>
    %34 = math.exp %33 : vector<2x128xf32>
    %cst_22 = arith.constant 1.000000e+00 : f32
    %35 = vector.broadcast %cst_22 : f32 to vector<2x128xf32>
    %36 = arith.addf %35, %34 : vector<2x128xf32>
    %37 = arith.divf %35, %36 : vector<2x128xf32>
    %38 = vector.extract_strided_slice %14 {offsets = [0, 256], sizes = [2, 128], strides = [1, 1]} : vector<2x384xf32> to vector<2x128xf32>
    %39 = vector.extract_strided_slice %21 {offsets = [0, 256], sizes = [2, 128], strides = [1, 1]} : vector<2x384xf32> to vector<2x128xf32>
    %40 = arith.mulf %29, %39 : vector<2x128xf32>
    %41 = arith.addf %38, %40 : vector<2x128xf32>
    %42 = math.tanh %41 : vector<2x128xf32>
    %cst_23 = arith.constant 1.000000e+00 : f32
    %43 = vector.broadcast %cst_23 : f32 to vector<2x128xf32>
    %44 = arith.subf %43, %37 : vector<2x128xf32>
    %45 = arith.mulf %44, %42 : vector<2x128xf32>
    %46 = arith.mulf %37, %5 : vector<2x128xf32>
    %47 = arith.addf %45, %46 : vector<2x128xf32>
    %48 = vector.shape_cast %47 : vector<2x128xf32> to vector<1x2x128xf32>
    %c0_24 = arith.constant 0 : index
    %c0_25 = arith.constant 0 : index
    %c0_26 = arith.constant 0 : index
    %49 = vector.load %arg8[%c0_24, %c0_25, %c0_26] : memref<1x2x128xf32, #tpu.memory_space<vmem>>, vector<1x2x128xf32>
    tpu.vector_store %arg8[%c0_24, %c0_25, %c0_26], %48 {strides = array<i32>} : memref<1x2x128xf32, #tpu.memory_space<vmem>>, vector<1x2x128xf32>,
    %c0_27 = arith.constant 0 : index
    %c0_28 = arith.constant 0 : index
    %50 = vector.load %arg9[%c0_27, %c0_28] : memref<2x128xf32, #tpu.memory_space<vmem>>, vector<2x128xf32>
    tpu.vector_store %arg9[%c0_27, %c0_28], %47 {strides = array<i32>} : memref<2x128xf32, #tpu.memory_space<vmem>>, vector<2x128xf32>,
    return
  }
  func.func @transform_0(%arg0: i32, %arg1: i32) -> (i32, i32) {
    %c0_i32 = arith.constant 0 : i32
    %c0_i32_0 = arith.constant 0 : i32
    return %arg0, %c0_i32 : i32, i32
  }
  func.func @transform_1(%arg0: i32, %arg1: i32) -> (i32, i32, i32) {
    %c0_i32 = arith.constant 0 : i32
    %c0_i32_0 = arith.constant 0 : i32
    return %arg1, %arg0, %c0_i32 : i32, i32, i32
  }
  func.func @transform_2(%arg0: i32, %arg1: i32) -> (i32, i32, i32) {
    %c0_i32 = arith.constant 0 : i32
    %c0_i32_0 = arith.constant 0 : i32
    %c0_i32_1 = arith.constant 0 : i32
    return %arg1, %c0_i32, %c0_i32_0 : i32, i32, i32
  }
  func.func @transform_3(%arg0: i32, %arg1: i32) -> (i32, i32, i32) {
    %c0_i32 = arith.constant 0 : i32
    %c0_i32_0 = arith.constant 0 : i32
    %c0_i32_1 = arith.constant 0 : i32
    return %arg1, %c0_i32, %c0_i32_0 : i32, i32, i32
  }
  func.func @transform_4(%arg0: i32, %arg1: i32) -> (i32, i32, i32) {
    %c0_i32 = arith.constant 0 : i32
    %c0_i32_0 = arith.constant 0 : i32
    %c0_i32_1 = arith.constant 0 : i32
    return %arg1, %c0_i32, %c0_i32_0 : i32, i32, i32
  }
  func.func @transform_5(%arg0: i32, %arg1: i32) -> (i32, i32, i32) {
    %c0_i32 = arith.constant 0 : i32
    %c0_i32_0 = arith.constant 0 : i32
    %c0_i32_1 = arith.constant 0 : i32
    return %arg1, %c0_i32, %c0_i32_0 : i32, i32, i32
  }
  func.func @transform_6(%arg0: i32, %arg1: i32) -> (i32, i32, i32) {
    %c0_i32 = arith.constant 0 : i32
    %c0_i32_0 = arith.constant 0 : i32
    return %arg1, %arg0, %c0_i32 : i32, i32, i32
  }
}

</mosaic_0001>

<llo_original>
// kernel: tpu_custom_call.1
$region0: #{tpu_custom_call.1}
  #allocation0 [shape = 'u32[]', space=smem, size = 0x4, offset = 0x4, fixed_abs, tag = 'smem constant byte address 0x4 - core index']
  #allocation1 [shape = 'u32[72,128]{1,0:T(1,128)}', space=vmem, size = 0x9000, scoped, tag = 'internal scratch']
  #allocation2 [shape = 'f32[2,128]{1,0:T(2,128)}', space=vmem, size = 0x400, scoped, tag = 'scratch operand']
  %s0 = inlined_call_operand.hbm [shape: f32[2,128], index: 0, kind: input, shape index: {}]
  %s1 = inlined_call_operand.hbm [shape: f32[2,2,128], index: 1, kind: input, shape index: {}]
  %s2 = inlined_call_operand.hbm [shape: f32[2,128,384], index: 2, kind: input, shape index: {}]
  %s3 = inlined_call_operand.hbm [shape: f32[2,128,384], index: 3, kind: input, shape index: {}]
  %s4 = inlined_call_operand.hbm [shape: f32[2,1,384], index: 4, kind: input, shape index: {}]
  %s5 = inlined_call_operand.hbm [shape: f32[2,1,384], index: 5, kind: input, shape index: {}]
  %s6 = inlined_call_operand.hbm [shape: f32[2,2,128], index: 6, kind: output, shape index: {}]
  %s7 = sld [smem:[#allocation0]]
  $region85: #{tpu_custom_call.1} parent=0
    _
  %s9 = ssub.s32 1, %s7
  %s10 = scalar_select 0, %s9, %s7
  $region1: #{tpu_custom_call.1} parent=0
    #allocation3 [shape = 'u8[1024]{0}', space=vmem, size = 0x400, scoped, tag = 'input window, operand 0, single buffered']
    #allocation4 [shape = 's32[2]{0}', space=sflag, size = 0x8, scoped, tag = 'scoped memory for tpu_custom_call.1']
    #allocation5 [shape = 's32[2]{0}', space=sflag, size = 0x8, scoped, tag = 'scoped memory for tpu_custom_call.1']
    #allocation6 [shape = 'u8[2048]{0}', space=vmem, size = 0x800, scoped, tag = 'input window, operand 1']
    #allocation7 [shape = 's32[2]{0}', space=sflag, size = 0x8, scoped, tag = 'scoped memory for tpu_custom_call.1']
    #allocation8 [shape = 'u8[393216]{0}', space=vmem, size = 0x60000, scoped, tag = 'input window, operand 2']
    #allocation9 [shape = 'u8[393216]{0}', space=vmem, size = 0x60000, scoped, tag = 'input window, operand 3']
    #allocation10 [shape = 's32[2]{0}', space=sflag, size = 0x8, scoped, tag = 'scoped memory for tpu_custom_call.1']
    #allocation11 [shape = 'u8[3072]{0}', space=vmem, size = 0xc00, scoped, tag = 'input window, operand 4']
    #allocation12 [shape = 'u8[3072]{0}', space=vmem, size = 0xc00, scoped, tag = 'input window, operand 5']
    #allocation13 [shape = 's32[2]{0}', space=sflag, size = 0x8, scoped, tag = 'scoped memory for tpu_custom_call.1']
    #allocation14 [shape = 'u8[2048]{0}', space=vmem, size = 0x800, scoped, tag = 'output window, operand 0']
    %11 = vsyncpa [#allocation4], 0
    %12 = vsyncpa [#allocation7], 0
    %s13 = scalar_lea.sflag [#allocation7], 1
    %14 = vsyncpa %s13, 0
    %15 = vsyncpa [#allocation10], 0
    %s16 = scalar_lea.sflag [#allocation10], 1
    %17 = vsyncpa %s16, 0
    %18 = vsyncpa [#allocation13], 0
    %s19 = scalar_lea.sflag [#allocation13], 1
    %20 = vsyncpa %s19, 0
    %21 = vsyncpa [#allocation5], 0
    %s22 = scalar_lea.sflag [#allocation5], 1
    %23 = vsyncpa %s22, 0
    loop: start=0, step=1, limit=4
    $region2: #{tpu_custom_call.1} parent=1 // loop_pre_header
      _
    $region3: #{tpu_custom_call.1} parent=1 // loop_header
      %s25 = sphi 0, %s29
      %p26 = scmp.ge.s32.totalorder %s25, 4
      %s32 = sphi 0, %s44
      %s33 = sphi 0, %s40
      %s34 = sphi 0, %s32
      %s35 = sphi 0, %s33
      %s36 = sphi 0, %s34
      %s37 = sphi 0, %s35
      %s47 = sphi 0, %s49
      %s50 = sphi 0, %s47
      %s51 = sphi 0, %s50
      %s67 = sphi 0, %s51
      %s75 = sphi 0, %s77
      %s78 = sphi 0, %s75
      %s79 = sphi 0, %s78
      %s95 = sphi 0, %s79
      %s101 = sphi 0, %s103
      %s104 = sphi 0, %s101
      %s105 = sphi 0, %s104
      %s121 = sphi 0, %s105
      %s127 = sphi 0, %s129
      %s130 = sphi 0, %s127
      %s131 = sphi 0, %s130
      %s147 = sphi 0, %s131
      %s153 = sphi 0, %s155
      %s156 = sphi 0, %s153
      %s157 = sphi 0, %s156
      %s173 = sphi 0, %s157
      %s179 = sphi 0, %s181
      %s182 = sphi 0, %s179
      %s183 = sphi 0, %s182
      %s199 = sphi 0, %s183
      %s207 = sphi 0, %s209
      %s210 = sphi 0, %s207
      %s211 = sphi 0, %s210
      %s227 = sphi 0, %s211
    $region4: #{tpu_custom_call.1} parent=1 // loop_header_branch
      %28 = sbr.rel (%p26) target = $region8
    $region5: #{tpu_custom_call.1} parent=1 // loop_body
      %s30 = ssub.s32 %s25, 1
      %s31 = ssub.s32 %s25, 2
      %s38 = sadd.s32 1, %s33
      %p39 = scmp.ge.s32.totalorder %s38, 2
      %s40 = scalar_select %p39, 0, %s38
      %s41 = sadd.s32 1, %s32
      %s42 = scalar_select %p39, %s41, %s32
      %p43 = scmp.ge.s32.totalorder %s42, 1
      %s44 = scalar_select %p43, 0, %s42
      %s45 = ssub.s32 %s32, %s44
      %p46 = scmp.eq.s32.totalorder %s45, 0
      %s48 = sadd.s32 %s47, 1
      %s49 = scalar_select %p46, %s47, %s48
      %p52 = pneg %p46
      %p53 = scmp.eq.s32.totalorder %s25, 1
      %p54 = por %p52, %p53
      %p55 = scmp.ne.s32.totalorder %s47, %s50
      %p56 = scmp.eq.s32.totalorder %s25, 0
      %p57 = por %p55, %p56
      %p58 = scmp.ne.s32.totalorder %s47, %s50
      %p59 = scmp.eq.s32.totalorder %s30, 1
      %p60 = por %p58, %p59
      %p61 = scmp.ne.s32.totalorder %s50, %s51
      %p62 = scmp.eq.s32.totalorder %s30, 0
      %p63 = por %p61, %p62
      %p64 = scmp.ne.s32.totalorder %s50, %s51
      %p65 = scmp.eq.s32.totalorder %s31, 1
      %p66 = por %p64, %p65
      %p68 = scmp.ne.s32.totalorder %s51, %s67
      %p69 = scmp.eq.s32.totalorder %s31, 0
      %p70 = por %p68, %p69
      %s71 = ssub.s32 %s33, %s40
      %s72 = ssub.s32 %s32, %s44
      %s73 = sor.u32 %s71, %s72
      %p74 = scmp.eq.s32.totalorder %s73, 0
      %s76 = sadd.s32 %s75, 1
      %s77 = scalar_select %p74, %s75, %s76
      %p80 = pneg %p74
      %p81 = scmp.eq.s32.totalorder %s25, 1
      %p82 = por %p80, %p81
      %p83 = scmp.ne.s32.totalorder %s75, %s78
      %p84 = scmp.eq.s32.totalorder %s25, 0
      %p85 = por %p83, %p84
      %p86 = scmp.ne.s32.totalorder %s75, %s78
      %p87 = scmp.eq.s32.totalorder %s30, 1
      %p88 = por %p86, %p87
      %p89 = scmp.ne.s32.totalorder %s78, %s79
      %p90 = scmp.eq.s32.totalorder %s30, 0
      %p91 = por %p89, %p90
      %p92 = scmp.ne.s32.totalorder %s78, %s79
      %p93 = scmp.eq.s32.totalorder %s31, 1
      %p94 = por %p92, %p93
      %p96 = scmp.ne.s32.totalorder %s79, %s95
      %p97 = scmp.eq.s32.totalorder %s31, 0
      %p98 = por %p96, %p97
      %s99 = ssub.s32 %s33, %s40
      %p100 = scmp.eq.s32.totalorder %s99, 0
      %s102 = sadd.s32 %s101, 1
      %s103 = scalar_select %p100, %s101, %s102
      %p106 = pneg %p100
      %p107 = scmp.eq.s32.totalorder %s25, 1
      %p108 = por %p106, %p107
      %p109 = scmp.ne.s32.totalorder %s101, %s104
      %p110 = scmp.eq.s32.totalorder %s25, 0
      %p111 = por %p109, %p110
      %p112 = scmp.ne.s32.totalorder %s101, %s104
      %p113 = scmp.eq.s32.totalorder %s30, 1
      %p114 = por %p112, %p113
      %p115 = scmp.ne.s32.totalorder %s104, %s105
      %p116 = scmp.eq.s32.totalorder %s30, 0
      %p117 = por %p115, %p116
      %p118 = scmp.ne.s32.totalorder %s104, %s105
      %p119 = scmp.eq.s32.totalorder %s31, 1
      %p120 = por %p118, %p119
      %p122 = scmp.ne.s32.totalorder %s105, %s121
      %p123 = scmp.eq.s32.totalorder %s31, 0
      %p124 = por %p122, %p123
      %s125 = ssub.s32 %s33, %s40
      %p126 = scmp.eq.s32.totalorder %s125, 0
      %s128 = sadd.s32 %s127, 1
      %s129 = scalar_select %p126, %s127, %s128
      %p132 = pneg %p126
      %p133 = scmp.eq.s32.totalorder %s25, 1
      %p134 = por %p132, %p133
      %p135 = scmp.ne.s32.totalorder %s127, %s130
      %p136 = scmp.eq.s32.totalorder %s25, 0
      %p137 = por %p135, %p136
      %p138 = scmp.ne.s32.totalorder %s127, %s130
      %p139 = scmp.eq.s32.totalorder %s30, 1
      %p140 = por %p138, %p139
      %p141 = scmp.ne.s32.totalorder %s130, %s131
      %p142 = scmp.eq.s32.totalorder %s30, 0
      %p143 = por %p141, %p142
      %p144 = scmp.ne.s32.totalorder %s130, %s131
      %p145 = scmp.eq.s32.totalorder %s31, 1
      %p146 = por %p144, %p145
      %p148 = scmp.ne.s32.totalorder %s131, %s147
      %p149 = scmp.eq.s32.totalorder %s31, 0
      %p150 = por %p148, %p149
      %s151 = ssub.s32 %s33, %s40
      %p152 = scmp.eq.s32.totalorder %s151, 0
      %s154 = sadd.s32 %s153, 1
      %s155 = scalar_select %p152, %s153, %s154
      %p158 = pneg %p152
      %p159 = scmp.eq.s32.totalorder %s25, 1
      %p160 = por %p158, %p159
      %p161 = scmp.ne.s32.totalorder %s153, %s156
      %p162 = scmp.eq.s32.totalorder %s25, 0
      %p163 = por %p161, %p162
      %p164 = scmp.ne.s32.totalorder %s153, %s156
      %p165 = scmp.eq.s32.totalorder %s30, 1
      %p166 = por %p164, %p165
      %p167 = scmp.ne.s32.totalorder %s156, %s157
      %p168 = scmp.eq.s32.totalorder %s30, 0
      %p169 = por %p167, %p168
      %p170 = scmp.ne.s32.totalorder %s156, %s157
      %p171 = scmp.eq.s32.totalorder %s31, 1
      %p172 = por %p170, %p171
      %p174 = scmp.ne.s32.totalorder %s157, %s173
      %p175 = scmp.eq.s32.totalorder %s31, 0
      %p176 = por %p174, %p175
      %s177 = ssub.s32 %s33, %s40
      %p178 = scmp.eq.s32.totalorder %s177, 0
      %s180 = sadd.s32 %s179, 1
      %s181 = scalar_select %p178, %s179, %s180
      %p184 = pneg %p178
      %p185 = scmp.eq.s32.totalorder %s25, 1
      %p186 = por %p184, %p185
      %p187 = scmp.ne.s32.totalorder %s179, %s182
      %p188 = scmp.eq.s32.totalorder %s25, 0
      %p189 = por %p187, %p188
      %p190 = scmp.ne.s32.totalorder %s179, %s182
      %p191 = scmp.eq.s32.totalorder %s30, 1
      %p192 = por %p190, %p191
      %p193 = scmp.ne.s32.totalorder %s182, %s183
      %p194 = scmp.eq.s32.totalorder %s30, 0
      %p195 = por %p193, %p194
      %p196 = scmp.ne.s32.totalorder %s182, %s183
      %p197 = scmp.eq.s32.totalorder %s31, 1
      %p198 = por %p196, %p197
      %p200 = scmp.ne.s32.totalorder %s183, %s199
      %p201 = scmp.eq.s32.totalorder %s31, 0
      %p202 = por %p200, %p201
      %s203 = ssub.s32 %s33, %s40
      %s204 = ssub.s32 %s32, %s44
      %s205 = sor.u32 %s203, %s204
      %p206 = scmp.eq.s32.totalorder %s205, 0
      %s208 = sadd.s32 %s207, 1
      %s209 = scalar_select %p206, %s207, %s208
      %p212 = pneg %p206
      %p213 = scmp.eq.s32.totalorder %s25, 1
      %p214 = por %p212, %p213
      %p215 = scmp.ne.s32.totalorder %s207, %s210
      %p216 = scmp.eq.s32.totalorder %s25, 0
      %p217 = por %p215, %p216
      %p218 = scmp.ne.s32.totalorder %s207, %s210
      %p219 = scmp.eq.s32.totalorder %s30, 1
      %p220 = por %p218, %p219
      %p221 = scmp.ne.s32.totalorder %s210, %s211
      %p222 = scmp.eq.s32.totalorder %s30, 0
      %p223 = por %p221, %p222
      %p224 = scmp.ne.s32.totalorder %s210, %s211
      %p225 = scmp.eq.s32.totalorder %s31, 1
      %p226 = por %p224, %p225
      %p228 = scmp.ne.s32.totalorder %s211, %s227
      %p229 = scmp.eq.s32.totalorder %s31, 0
      %p230 = por %p228, %p229
      %p231 = scmp.le.s32.totalorder 1, %s25
      %p232 = scmp.lt.s32.totalorder %s25, 3
      %p233 = pnand %p231, %p232
      %p234 = pneg %p233
      // Predicated region
      $region9: #{tpu_custom_call.1} parent=5 // pred_check
        _
      $region10: #{tpu_custom_call.1} parent=5 // pred_check_branch
        %236 = sbr.rel (%p233) target = $region12
      $region11: #{tpu_custom_call.1} parent=5 // pred_region
        %s237 = ssub.s32 %s25, 1
        // Predicated region
        $region13: #{tpu_custom_call.1} parent=11 // pred_check
          %p238 = pneg %p63
        $region14: #{tpu_custom_call.1} parent=11 // pred_check_branch
          %240 = sbr.rel (%p238) target = $region16
        $region15: #{tpu_custom_call.1} parent=11 // pred_region
          %242 = vsyncadd [#allocation4], 0
          %s243 = smul.addr %s34, 2
          %s244 = scalar_lea.hbm %s0, %s243
          %s246 = sshll.u32 %s244, 4
          %s247 = int_to_ptr.hbm [resolvable:$true] %s246
          %s248 = sshll.u32 [#allocation3], 4
          %s249 = int_to_ptr.vmem [resolvable:$true] %s248
          %251 = dma.hbm_to_vmem [thread:$0]  %s247, 32, %s249, [#allocation4]
        $region16: #{tpu_custom_call.1} parent=11 // pred_fallthru
          _
      $region12: #{tpu_custom_call.1} parent=5 // pred_fallthru
        _
      %p252 = scmp.lt.s32.totalorder %s25, 2
      // Predicated region
      $region17: #{tpu_custom_call.1} parent=5 // pred_check
        %p253 = pneg %p252
      $region18: #{tpu_custom_call.1} parent=5 // pred_check_branch
        %255 = sbr.rel (%p253) target = $region20
      $region19: #{tpu_custom_call.1} parent=5 // pred_region
        // Predicated region
        $region21: #{tpu_custom_call.1} parent=19 // pred_check
          %p256 = pneg %p85
        $region22: #{tpu_custom_call.1} parent=19 // pred_check_branch
          %258 = sbr.rel (%p256) target = $region24
        $region23: #{tpu_custom_call.1} parent=19 // pred_region
          %s259 = sand.u32 %s25, 1
          %s260 = scalar_lea.sflag [#allocation7], %s259
          %s261 = sand.u32 %s75, 1
          %s262 = smul.addr %s261, 2
          %s263 = scalar_lea.vmem [#allocation6], %s262
          %265 = vsyncadd %s260, 0
          %s266 = sadd.s32 %s32, %s33
          %s267 = smul.addr %s266, 2
          %s268 = scalar_lea.hbm %s1, %s267
          %s270 = sshll.u32 %s268, 4
          %s271 = int_to_ptr.hbm [resolvable:$true] %s270
          %s272 = sshll.u32 %s263, 4
          %s273 = int_to_ptr.vmem [resolvable:$true] %s272
          %275 = dma.hbm_to_vmem [thread:$0]  %s271, 32, %s273, %s260
        $region24: #{tpu_custom_call.1} parent=19 // pred_fallthru
          _
        // Predicated region
        $region25: #{tpu_custom_call.1} parent=19 // pred_check
          %p276 = pneg %p111
        $region26: #{tpu_custom_call.1} parent=19 // pred_check_branch
          %278 = sbr.rel (%p276) target = $region28
        $region27: #{tpu_custom_call.1} parent=19 // pred_region
          %s279 = sand.u32 %s25, 1
          %s280 = scalar_lea.sflag [#allocation7], %s279
          %s281 = sand.u32 %s101, 1
          %s282 = smul.addr %s281, 384
          %s283 = scalar_lea.vmem [#allocation8], %s282
          %285 = vsyncadd %s280, 0
          %s286 = smul.addr %s33, 48
          %s287 = smul.addr %s286, 8
          %s288 = scalar_lea.hbm %s2, %s287
          %s289 = sshll.u32 %s288, 4
          %s290 = int_to_ptr.hbm [resolvable:$true] %s289
          %s291 = sshll.u32 %s283, 4
          %s292 = int_to_ptr.vmem [resolvable:$true] %s291
          %297 = dma.hbm_to_vmem [thread:$0]  %s290, 6144, %s292, %s280, 384, 384, 24
        $region28: #{tpu_custom_call.1} parent=19 // pred_fallthru
          _
        // Predicated region
        $region29: #{tpu_custom_call.1} parent=19 // pred_check
          %p298 = pneg %p137
        $region30: #{tpu_custom_call.1} parent=19 // pred_check_branch
          %300 = sbr.rel (%p298) target = $region32
        $region31: #{tpu_custom_call.1} parent=19 // pred_region
          %s301 = sand.u32 %s25, 1
          %s302 = scalar_lea.sflag [#allocation10], %s301
          %s303 = sand.u32 %s127, 1
          %s304 = smul.addr %s303, 384
          %s305 = scalar_lea.vmem [#allocation9], %s304
          %307 = vsyncadd %s302, 0
          %s308 = smul.addr %s33, 48
          %s309 = smul.addr %s308, 8
          %s310 = scalar_lea.hbm %s3, %s309
          %s311 = sshll.u32 %s310, 4
          %s312 = int_to_ptr.hbm [resolvable:$true] %s311
          %s313 = sshll.u32 %s305, 4
          %s314 = int_to_ptr.vmem [resolvable:$true] %s313
          %319 = dma.hbm_to_vmem [thread:$0]  %s312, 6144, %s314, %s302, 384, 384, 24
        $region32: #{tpu_custom_call.1} parent=19 // pred_fallthru
          _
        // Predicated region
        $region33: #{tpu_custom_call.1} parent=19 // pred_check
          %p320 = pneg %p163
        $region34: #{tpu_custom_call.1} parent=19 // pred_check_branch
          %322 = sbr.rel (%p320) target = $region36
        $region35: #{tpu_custom_call.1} parent=19 // pred_region
          %s323 = sand.u32 %s25, 1
          %s324 = scalar_lea.sflag [#allocation10], %s323
          %s325 = sand.u32 %s153, 1
          %s326 = smul.addr %s325, 3
          %s327 = scalar_lea.vmem [#allocation11], %s326
          %329 = vsyncadd %s324, 0
          %s330 = smul.addr %s33, 3
          %s331 = scalar_lea.hbm %s4, %s330
          %s333 = sshll.u32 %s331, 4
          %s334 = int_to_ptr.hbm [resolvable:$true] %s333
          %s335 = sshll.u32 %s327, 4
          %s336 = int_to_ptr.vmem [resolvable:$true] %s335
          %338 = dma.hbm_to_vmem [thread:$0]  %s334, 48, %s336, %s324
        $region36: #{tpu_custom_call.1} parent=19 // pred_fallthru
          _
        // Predicated region
        $region37: #{tpu_custom_call.1} parent=19 // pred_check
          %p339 = pneg %p189
        $region38: #{tpu_custom_call.1} parent=19 // pred_check_branch
          %341 = sbr.rel (%p339) target = $region40
        $region39: #{tpu_custom_call.1} parent=19 // pred_region
          %s342 = sand.u32 %s179, 1
          %s343 = scalar_lea.sflag [#allocation13], %s342
          %s344 = sand.u32 %s179, 1
          %s345 = smul.addr %s344, 3
          %s346 = scalar_lea.vmem [#allocation12], %s345
          %348 = vsyncadd %s343, 0
          %s349 = smul.addr %s33, 3
          %s350 = scalar_lea.hbm %s5, %s349
          %s352 = sshll.u32 %s350, 4
          %s353 = int_to_ptr.hbm [resolvable:$true] %s352
          %s354 = sshll.u32 %s346, 4
          %s355 = int_to_ptr.vmem [resolvable:$true] %s354
          %357 = dma.hbm_to_vmem [thread:$0]  %s353, 48, %s355, %s343
        $region40: #{tpu_custom_call.1} parent=19 // pred_fallthru
          _
      $region20: #{tpu_custom_call.1} parent=5 // pred_fallthru
        _
      %p358 = scmp.le.s32.totalorder 1, %s25
      %p359 = scmp.lt.s32.totalorder %s25, 3
      %p360 = pnand %p358, %p359
      %p361 = pneg %p360
      // Predicated region
      $region41: #{tpu_custom_call.1} parent=5 // pred_check
        _
      $region42: #{tpu_custom_call.1} parent=5 // pred_check_branch
        %363 = sbr.rel (%p360) target = $region44
      $region43: #{tpu_custom_call.1} parent=5 // pred_region
        %s364 = ssub.s32 %s25, 1
        // Predicated region
        $region45: #{tpu_custom_call.1} parent=43 // pred_check
          %p365 = pneg %p63
        $region46: #{tpu_custom_call.1} parent=43 // pred_check_branch
          %367 = sbr.rel (%p365) target = $region48
        $region47: #{tpu_custom_call.1} parent=43 // pred_region
          %369 = dma.done [#allocation4], 32
        $region48: #{tpu_custom_call.1} parent=43 // pred_fallthru
          _
        %s370 = sand.u32 %s30, 1
        %s371 = scalar_lea.sflag [#allocation7], %s370
        %s372 = sand.u32 %s78, 1
        %s373 = smul.addr %s372, 2
        %s374 = scalar_lea.vmem [#allocation6], %s373
        // Predicated region
        $region49: #{tpu_custom_call.1} parent=43 // pred_check
          %p375 = pneg %p91
        $region50: #{tpu_custom_call.1} parent=43 // pred_check_branch
          %377 = sbr.rel (%p375) target = $region52
        $region51: #{tpu_custom_call.1} parent=43 // pred_region
          %379 = dma.done %s371, 32
        $region52: #{tpu_custom_call.1} parent=43 // pred_fallthru
          _
        %s380 = sand.u32 %s30, 1
        %s381 = scalar_lea.sflag [#allocation7], %s380
        %s382 = sand.u32 %s104, 1
        %s383 = smul.addr %s382, 384
        %s384 = scalar_lea.vmem [#allocation8], %s383
        // Predicated region
        $region53: #{tpu_custom_call.1} parent=43 // pred_check
          %p385 = pneg %p117
        $region54: #{tpu_custom_call.1} parent=43 // pred_check_branch
          %387 = sbr.rel (%p385) target = $region56
        $region55: #{tpu_custom_call.1} parent=43 // pred_region
          %389 = dma.done %s381, 6144
        $region56: #{tpu_custom_call.1} parent=43 // pred_fallthru
          _
        %s390 = sand.u32 %s30, 1
        %s391 = scalar_lea.sflag [#allocation10], %s390
        %s392 = sand.u32 %s130, 1
        %s393 = smul.addr %s392, 384
        %s394 = scalar_lea.vmem [#allocation9], %s393
        // Predicated region
        $region57: #{tpu_custom_call.1} parent=43 // pred_check
          %p395 = pneg %p143
        $region58: #{tpu_custom_call.1} parent=43 // pred_check_branch
          %397 = sbr.rel (%p395) target = $region60
        $region59: #{tpu_custom_call.1} parent=43 // pred_region
          %399 = dma.done %s391, 6144
        $region60: #{tpu_custom_call.1} parent=43 // pred_fallthru
          _
        %s400 = sand.u32 %s30, 1
        %s401 = scalar_lea.sflag [#allocation10], %s400
        %s402 = sand.u32 %s156, 1
        %s403 = smul.addr %s402, 3
        %s404 = scalar_lea.vmem [#allocation11], %s403
        // Predicated region
        $region61: #{tpu_custom_call.1} parent=43 // pred_check
          %p405 = pneg %p169
        $region62: #{tpu_custom_call.1} parent=43 // pred_check_branch
          %407 = sbr.rel (%p405) target = $region64
        $region63: #{tpu_custom_call.1} parent=43 // pred_region
          %409 = dma.done %s401, 48
        $region64: #{tpu_custom_call.1} parent=43 // pred_fallthru
          _
        %s410 = sand.u32 %s182, 1
        %s411 = scalar_lea.sflag [#allocation13], %s410
        %s412 = sand.u32 %s182, 1
        %s413 = smul.addr %s412, 3
        %s414 = scalar_lea.vmem [#allocation12], %s413
        // Predicated region
        $region65: #{tpu_custom_call.1} parent=43 // pred_check
          %p415 = pneg %p195
        $region66: #{tpu_custom_call.1} parent=43 // pred_check_branch
          %417 = sbr.rel (%p415) target = $region68
        $region67: #{tpu_custom_call.1} parent=43 // pred_region
          %419 = dma.done %s411, 48
        $region68: #{tpu_custom_call.1} parent=43 // pred_fallthru
          _
        %p420 = pneg %p63
        %p421 = pneg %p60
        %s422 = sand.u32 %s30, 1
        %s423 = scalar_lea.sflag [#allocation7], %s422
        %s424 = sand.u32 %s78, 1
        %s425 = smul.addr %s424, 2
        %s426 = scalar_lea.vmem [#allocation6], %s425
        %p427 = pneg %p91
        %p428 = pneg %p88
        %s429 = sand.u32 %s30, 1
        %s430 = scalar_lea.sflag [#allocation7], %s429
        %s431 = sand.u32 %s104, 1
        %s432 = smul.addr %s431, 384
        %s433 = scalar_lea.vmem [#allocation8], %s432
        %p434 = pneg %p117
        %p435 = pneg %p114
        %s436 = sand.u32 %s30, 1
        %s437 = scalar_lea.sflag [#allocation10], %s436
        %s438 = sand.u32 %s130, 1
        %s439 = smul.addr %s438, 384
        %s440 = scalar_lea.vmem [#allocation9], %s439
        %p441 = pneg %p143
        %p442 = pneg %p140
        %s443 = sand.u32 %s30, 1
        %s444 = scalar_lea.sflag [#allocation10], %s443
        %s445 = sand.u32 %s156, 1
        %s446 = smul.addr %s445, 3
        %s447 = scalar_lea.vmem [#allocation11], %s446
        %p448 = pneg %p169
        %p449 = pneg %p166
        %s450 = sand.u32 %s182, 1
        %s451 = scalar_lea.sflag [#allocation13], %s450
        %s452 = sand.u32 %s182, 1
        %s453 = smul.addr %s452, 3
        %s454 = scalar_lea.vmem [#allocation12], %s453
        %p455 = pneg %p195
        %p456 = pneg %p192
        %p457 = pneg %p223
        %p458 = pneg %p220
        %s459 = sand.u32 %s210, 1
        %s460 = scalar_lea.sflag [#allocation5], %s459
        %s461 = sand.u32 %s210, 1
        %s462 = smul.addr %s461, 2
        %s463 = scalar_lea.vmem [#allocation14], %s462
        %p464 = scmp.eq.s32.totalorder %s35, 0
        // Predicated region
        $region69: #{tpu_custom_call.1} parent=43 // pred_check
          %p465 = pneg %p464
        $region70: #{tpu_custom_call.1} parent=43 // pred_check_branch
          %467 = sbr.rel (%p465) target = $region72
        $region71: #{tpu_custom_call.1} parent=43 // pred_region
          %v468 = vld [vmem:[#allocation3] sm:$0x3]
          %469 = vst [vmem:[#allocation2] sm:$0x3] %v468
        $region72: #{tpu_custom_call.1} parent=43 // pred_fallthru
          _
        %v470 = vld [vmem:[#allocation2] sm:$0x3]
        %v471 = vld [vmem:[%s374] sm:$0x3]
        %v472 = vld [vmem:[%s384] sm:$0xff]
        %v473 = vld [vmem:[%s384 + $0x8] sm:$0xff]
        %v474 = vld [vmem:[%s384 + $0x10] sm:$0xff]
        %v475 = vld [vmem:[%s384 + $0x18] sm:$0xff]
        %v476 = vld [vmem:[%s384 + $0x20] sm:$0xff]
        %v477 = vld [vmem:[%s384 + $0x28] sm:$0xff]
        %v478 = vld [vmem:[%s384 + $0x30] sm:$0xff]
        %v479 = vld [vmem:[%s384 + $0x38] sm:$0xff]
        %v480 = vld [vmem:[%s384 + $0x40] sm:$0xff]
        %v481 = vld [vmem:[%s384 + $0x48] sm:$0xff]
        %v482 = vld [vmem:[%s384 + $0x50] sm:$0xff]
        %v483 = vld [vmem:[%s384 + $0x58] sm:$0xff]
        %v484 = vld [vmem:[%s384 + $0x60] sm:$0xff]
        %v485 = vld [vmem:[%s384 + $0x68] sm:$0xff]
        %v486 = vld [vmem:[%s384 + $0x70] sm:$0xff]
        %v487 = vld [vmem:[%s384 + $0x78] sm:$0xff]
        %v488 = vld [vmem:[%s384 + $0x80] sm:$0xff]
        %v489 = vld [vmem:[%s384 + $0x88] sm:$0xff]
        %v490 = vld [vmem:[%s384 + $0x90] sm:$0xff]
        %v491 = vld [vmem:[%s384 + $0x98] sm:$0xff]
        %v492 = vld [vmem:[%s384 + $0xa0] sm:$0xff]
        %v493 = vld [vmem:[%s384 + $0xa8] sm:$0xff]
        %v494 = vld [vmem:[%s384 + $0xb0] sm:$0xff]
        %v495 = vld [vmem:[%s384 + $0xb8] sm:$0xff]
        %v496 = vld [vmem:[%s384 + $0xc0] sm:$0xff]
        %v497 = vld [vmem:[%s384 + $0xc8] sm:$0xff]
        %v498 = vld [vmem:[%s384 + $0xd0] sm:$0xff]
        %v499 = vld [vmem:[%s384 + $0xd8] sm:$0xff]
        %v500 = vld [vmem:[%s384 + $0xe0] sm:$0xff]
        %v501 = vld [vmem:[%s384 + $0xe8] sm:$0xff]
        %v502 = vld [vmem:[%s384 + $0xf0] sm:$0xff]
        %v503 = vld [vmem:[%s384 + $0xf8] sm:$0xff]
        %v504 = vld [vmem:[%s384 + $0x100] sm:$0xff]
        %v505 = vld [vmem:[%s384 + $0x108] sm:$0xff]
        %v506 = vld [vmem:[%s384 + $0x110] sm:$0xff]
        %v507 = vld [vmem:[%s384 + $0x118] sm:$0xff]
        %v508 = vld [vmem:[%s384 + $0x120] sm:$0xff]
        %v509 = vld [vmem:[%s384 + $0x128] sm:$0xff]
        %v510 = vld [vmem:[%s384 + $0x130] sm:$0xff]
        %v511 = vld [vmem:[%s384 + $0x138] sm:$0xff]
        %v512 = vld [vmem:[%s384 + $0x140] sm:$0xff]
        %v513 = vld [vmem:[%s384 + $0x148] sm:$0xff]
        %v514 = vld [vmem:[%s384 + $0x150] sm:$0xff]
        %v515 = vld [vmem:[%s384 + $0x158] sm:$0xff]
        %v516 = vld [vmem:[%s384 + $0x160] sm:$0xff]
        %v517 = vld [vmem:[%s384 + $0x168] sm:$0xff]
        %v518 = vld [vmem:[%s384 + $0x170] sm:$0xff]
        %v519 = vld [vmem:[%s384 + $0x178] sm:$0xff]
        %v520 = vld [vmem:[%s404] sm:$0x7]
        %v522 = vperm.slane %v520, 0
        %v523 = vperm.slane %v520, 1
        %v524 = vperm.slane %v520, 2
        %528 = vmatpush.msra.mxu0 %v517
        %529 = vmatpush.msra.mxu0 %v514
        %530 = vmatpush.msra.mxu0 %v511
        %531 = vmatpush.msra.mxu0 %v508
        %532 = vmatpush.msra.mxu0 %v505
        %533 = vmatpush.msra.mxu0 %v502
        %534 = vmatpush.msra.mxu0 %v499
        %535 = vmatpush.msra.mxu0 %v496
        %536 = vmatpush.msra.mxu0 %v493
        %537 = vmatpush.msra.mxu0 %v490
        %538 = vmatpush.msra.mxu0 %v487
        %539 = vmatpush.msra.mxu0 %v484
        %540 = vmatpush.msra.mxu0 %v481
        %541 = vmatpush.msra.mxu0 %v478
        %542 = vmatpush.msra.mxu0 %v475
        %543 = vmatpush.msra.mxu0 %v472
        %544 = vmatmul.f32.gmra.mxu0 %v470
        %v545 = vpop.f32.mrf.mxu0
        %v546 = vadd.f32 %v522, %v545
        %547 = vdwg.mxu0
        %548 = vmatpush.msra.mxu0 %v518
        %549 = vmatpush.msra.mxu0 %v515
        %550 = vmatpush.msra.mxu0 %v512
        %551 = vmatpush.msra.mxu0 %v509
        %552 = vmatpush.msra.mxu0 %v506
        %553 = vmatpush.msra.mxu0 %v503
        %554 = vmatpush.msra.mxu0 %v500
        %555 = vmatpush.msra.mxu0 %v497
        %556 = vmatpush.msra.mxu0 %v494
        %557 = vmatpush.msra.mxu0 %v491
        %558 = vmatpush.msra.mxu0 %v488
        %559 = vmatpush.msra.mxu0 %v485
        %560 = vmatpush.msra.mxu0 %v482
        %561 = vmatpush.msra.mxu0 %v479
        %562 = vmatpush.msra.mxu0 %v476
        %563 = vmatpush.msra.mxu0 %v473
        %564 = vmatmul.f32.gmra.mxu0 %v470
        %v565 = vpop.f32.mrf.mxu0
        %v566 = vadd.f32 %v523, %v565
        %567 = vdwg.mxu0
        %568 = vmatpush.msra.mxu0 %v519
        %569 = vmatpush.msra.mxu0 %v516
        %570 = vmatpush.msra.mxu0 %v513
        %571 = vmatpush.msra.mxu0 %v510
        %572 = vmatpush.msra.mxu0 %v507
        %573 = vmatpush.msra.mxu0 %v504
        %574 = vmatpush.msra.mxu0 %v501
        %575 = vmatpush.msra.mxu0 %v498
        %576 = vmatpush.msra.mxu0 %v495
        %577 = vmatpush.msra.mxu0 %v492
        %578 = vmatpush.msra.mxu0 %v489
        %579 = vmatpush.msra.mxu0 %v486
        %580 = vmatpush.msra.mxu0 %v483
        %581 = vmatpush.msra.mxu0 %v480
        %582 = vmatpush.msra.mxu0 %v477
        %583 = vmatpush.msra.mxu0 %v474
        %584 = vmatmul.f32.gmra.mxu0 %v470
        %v585 = vpop.f32.mrf.mxu0
        %v586 = vadd.f32 %v524, %v585
        %587 = vdwg.mxu0
        %v588 = vld [vmem:[%s394] sm:$0xff]
        %v589 = vld [vmem:[%s394 + $0x8] sm:$0xff]
        %v590 = vld [vmem:[%s394 + $0x10] sm:$0xff]
        %v591 = vld [vmem:[%s394 + $0x18] sm:$0xff]
        %v592 = vld [vmem:[%s394 + $0x20] sm:$0xff]
        %v593 = vld [vmem:[%s394 + $0x28] sm:$0xff]
        %v594 = vld [vmem:[%s394 + $0x30] sm:$0xff]
        %v595 = vld [vmem:[%s394 + $0x38] sm:$0xff]
        %v596 = vld [vmem:[%s394 + $0x40] sm:$0xff]
        %v597 = vld [vmem:[%s394 + $0x48] sm:$0xff]
        %v598 = vld [vmem:[%s394 + $0x50] sm:$0xff]
        %v599 = vld [vmem:[%s394 + $0x58] sm:$0xff]
        %v600 = vld [vmem:[%s394 + $0x60] sm:$0xff]
        %v601 = vld [vmem:[%s394 + $0x68] sm:$0xff]
        %v602 = vld [vmem:[%s394 + $0x70] sm:$0xff]
        %v603 = vld [vmem:[%s394 + $0x78] sm:$0xff]
        %v604 = vld [vmem:[%s394 + $0x80] sm:$0xff]
        %v605 = vld [vmem:[%s394 + $0x88] sm:$0xff]
        %v606 = vld [vmem:[%s394 + $0x90] sm:$0xff]
        %v607 = vld [vmem:[%s394 + $0x98] sm:$0xff]
        %v608 = vld [vmem:[%s394 + $0xa0] sm:$0xff]
        %v609 = vld [vmem:[%s394 + $0xa8] sm:$0xff]
        %v610 = vld [vmem:[%s394 + $0xb0] sm:$0xff]
        %v611 = vld [vmem:[%s394 + $0xb8] sm:$0xff]
        %v612 = vld [vmem:[%s394 + $0xc0] sm:$0xff]
        %v613 = vld [vmem:[%s394 + $0xc8] sm:$0xff]
        %v614 = vld [vmem:[%s394 + $0xd0] sm:$0xff]
        %v615 = vld [vmem:[%s394 + $0xd8] sm:$0xff]
        %v616 = vld [vmem:[%s394 + $0xe0] sm:$0xff]
        %v617 = vld [vmem:[%s394 + $0xe8] sm:$0xff]
        %v618 = vld [vmem:[%s394 + $0xf0] sm:$0xff]
        %v619 = vld [vmem:[%s394 + $0xf8] sm:$0xff]
        %v620 = vld [vmem:[%s394 + $0x100] sm:$0xff]
        %v621 = vld [vmem:[%s394 + $0x108] sm:$0xff]
        %v622 = vld [vmem:[%s394 + $0x110] sm:$0xff]
        %v623 = vld [vmem:[%s394 + $0x118] sm:$0xff]
        %v624 = vld [vmem:[%s394 + $0x120] sm:$0xff]
        %v625 = vld [vmem:[%s394 + $0x128] sm:$0xff]
        %v626 = vld [vmem:[%s394 + $0x130] sm:$0xff]
        %v627 = vld [vmem:[%s394 + $0x138] sm:$0xff]
        %v628 = vld [vmem:[%s394 + $0x140] sm:$0xff]
        %v629 = vld [vmem:[%s394 + $0x148] sm:$0xff]
        %v630 = vld [vmem:[%s394 + $0x150] sm:$0xff]
        %v631 = vld [vmem:[%s394 + $0x158] sm:$0xff]
        %v632 = vld [vmem:[%s394 + $0x160] sm:$0xff]
        %v633 = vld [vmem:[%s394 + $0x168] sm:$0xff]
        %v634 = vld [vmem:[%s394 + $0x170] sm:$0xff]
        %v635 = vld [vmem:[%s394 + $0x178] sm:$0xff]
        %v636 = vld [vmem:[%s414] sm:$0x7]
        %v638 = vperm.slane %v636, 0
        %v639 = vperm.slane %v636, 1
        %v640 = vperm.slane %v636, 2
        %644 = vmatpush.msra.mxu0 %v633
        %645 = vmatpush.msra.mxu0 %v630
        %646 = vmatpush.msra.mxu0 %v627
        %647 = vmatpush.msra.mxu0 %v624
        %648 = vmatpush.msra.mxu0 %v621
        %649 = vmatpush.msra.mxu0 %v618
        %650 = vmatpush.msra.mxu0 %v615
        %651 = vmatpush.msra.mxu0 %v612
        %652 = vmatpush.msra.mxu0 %v609
        %653 = vmatpush.msra.mxu0 %v606
        %654 = vmatpush.msra.mxu0 %v603
        %655 = vmatpush.msra.mxu0 %v600
        %656 = vmatpush.msra.mxu0 %v597
        %657 = vmatpush.msra.mxu0 %v594
        %658 = vmatpush.msra.mxu0 %v591
        %659 = vmatpush.msra.mxu0 %v588
        %660 = vmatmul.f32.gmra.mxu0 %v471
        %v661 = vpop.f32.mrf.mxu0
        %v662 = vadd.f32 %v638, %v661
        %663 = vdwg.mxu0
        %664 = vmatpush.msra.mxu0 %v634
        %665 = vmatpush.msra.mxu0 %v631
        %666 = vmatpush.msra.mxu0 %v628
        %667 = vmatpush.msra.mxu0 %v625
        %668 = vmatpush.msra.mxu0 %v622
        %669 = vmatpush.msra.mxu0 %v619
        %670 = vmatpush.msra.mxu0 %v616
        %671 = vmatpush.msra.mxu0 %v613
        %672 = vmatpush.msra.mxu0 %v610
        %673 = vmatpush.msra.mxu0 %v607
        %674 = vmatpush.msra.mxu0 %v604
        %675 = vmatpush.msra.mxu0 %v601
        %676 = vmatpush.msra.mxu0 %v598
        %677 = vmatpush.msra.mxu0 %v595
        %678 = vmatpush.msra.mxu0 %v592
        %679 = vmatpush.msra.mxu0 %v589
        %680 = vmatmul.f32.gmra.mxu0 %v471
        %v681 = vpop.f32.mrf.mxu0
        %v682 = vadd.f32 %v639, %v681
        %683 = vdwg.mxu0
        %684 = vmatpush.msra.mxu0 %v635
        %685 = vmatpush.msra.mxu0 %v632
        %686 = vmatpush.msra.mxu0 %v629
        %687 = vmatpush.msra.mxu0 %v626
        %688 = vmatpush.msra.mxu0 %v623
        %689 = vmatpush.msra.mxu0 %v620
        %690 = vmatpush.msra.mxu0 %v617
        %691 = vmatpush.msra.mxu0 %v614
        %692 = vmatpush.msra.mxu0 %v611
        %693 = vmatpush.msra.mxu0 %v608
        %694 = vmatpush.msra.mxu0 %v605
        %695 = vmatpush.msra.mxu0 %v602
        %696 = vmatpush.msra.mxu0 %v599
        %697 = vmatpush.msra.mxu0 %v596
        %698 = vmatpush.msra.mxu0 %v593
        %699 = vmatpush.msra.mxu0 %v590
        %700 = vmatmul.f32.gmra.mxu0 %v471
        %v701 = vpop.f32.mrf.mxu0
        %v702 = vadd.f32 %v640, %v701
        %703 = vdwg.mxu0
        %v704 = vadd.f32 %v546, %v662
        %v705 = vxor.u32 %v704, 2147483648
        %v706 = vmul.f32 %v705, 1.442695
        %v707 = vpow.pop %v706
        %v708 = vadd.f32 %v707, 1.0
        %v709 = vrcp.pop %v708
        %v710 = vmul.f32 %v708, %v709
        %v711 = vsub.f32 1.0, %v710
        %v712 = vmul.f32 %v709, %v711
        %v713 = vadd.f32 %v709, %v712
        %vm714 = vweird.f32 %v708
        %vm715 = vweird.f32 %v709
        %vm716 = vmor %vm714, %vm715
        %v717 = vsel %vm716, %v709, %v713
        %v718 = vand.u32 2147483647, %v708
        %vm719 = vcmp.eq.f32.partialorder %v718, 8.507059e+37
        %v720 = vand.u32 %v708, 2147483648
        %v721 = vor.u32 1.1754944e-38, %v720
        %v722 = vsel %vm719, %v721, %v717
        %v723 = vmul.f32 1.0, %v722
        %v724 = vadd.f32 %v566, %v682
        %v725 = vxor.u32 %v724, 2147483648
        %v726 = vmul.f32 %v725, 1.442695
        %v727 = vpow.pop %v726
        %v728 = vadd.f32 %v727, 1.0
        %v729 = vrcp.pop %v728
        %v730 = vmul.f32 %v728, %v729
        %v731 = vsub.f32 1.0, %v730
        %v732 = vmul.f32 %v729, %v731
        %v733 = vadd.f32 %v729, %v732
        %vm734 = vweird.f32 %v728
        %vm735 = vweird.f32 %v729
        %vm736 = vmor %vm734, %vm735
        %v737 = vsel %vm736, %v729, %v733
        %v738 = vand.u32 2147483647, %v728
        %vm739 = vcmp.eq.f32.partialorder %v738, 8.507059e+37
        %v740 = vand.u32 %v728, 2147483648
        %v741 = vor.u32 1.1754944e-38, %v740
        %v742 = vsel %vm739, %v741, %v737
        %v743 = vmul.f32 1.0, %v742
        %v744 = vmul.f32 %v723, %v702
        %v745 = vadd.f32 %v586, %v744
        %v746 = vtanh.pop %v745
        %v747 = vsub.f32 1.0, %v743
        %v748 = vmul.f32 %v747, %v746
        %v749 = vmul.f32 %v743, %v471
        %v750 = vadd.f32 %v748, %v749
        %751 = vst [vmem:[%s463] sm:$0x3] %v750
        %752 = vst [vmem:[#allocation2] sm:$0x3] %v750
        %s753 = sand.u32 %s210, 1
        %s754 = scalar_lea.sflag [#allocation5], %s753
        %s755 = sand.u32 %s210, 1
        %s756 = smul.addr %s755, 2
        %s757 = scalar_lea.vmem [#allocation14], %s756
        // Predicated region
        $region73: #{tpu_custom_call.1} parent=43 // pred_check
          %p758 = pneg %p220
        $region74: #{tpu_custom_call.1} parent=43 // pred_check_branch
          %760 = sbr.rel (%p758) target = $region76
        $region75: #{tpu_custom_call.1} parent=43 // pred_region
          %762 = vsyncadd %s754, 0
          %s763 = sadd.s32 %s34, %s35
          %s764 = smul.addr %s763, 2
          %s765 = scalar_lea.hbm %s6, %s764
          %s767 = sshll.u32 %s757, 4
          %s768 = int_to_ptr.vmem [resolvable:$true] %s767
          %s769 = sshll.u32 %s765, 4
          %s770 = int_to_ptr.hbm [resolvable:$true] %s769
          %772 = dma.vmem_to_hbm [thread:$0]  %s768, 32, %s770, %s754
        $region76: #{tpu_custom_call.1} parent=43 // pred_fallthru
          _
      $region44: #{tpu_custom_call.1} parent=5 // pred_fallthru
        _
      %p773 = scmp.le.s32.totalorder 2, %s25
      // Predicated region
      $region77: #{tpu_custom_call.1} parent=5 // pred_check
        %p774 = pneg %p773
      $region78: #{tpu_custom_call.1} parent=5 // pred_check_branch
        %776 = sbr.rel (%p774) target = $region80
      $region79: #{tpu_custom_call.1} parent=5 // pred_region
        %s777 = ssub.s32 %s25, 2
        // Predicated region
        $region81: #{tpu_custom_call.1} parent=79 // pred_check
          %p778 = pneg %p226
        $region82: #{tpu_custom_call.1} parent=79 // pred_check_branch
          %780 = sbr.rel (%p778) target = $region84
        $region83: #{tpu_custom_call.1} parent=79 // pred_region
          %s781 = sand.u32 %s211, 1
          %s782 = scalar_lea.sflag [#allocation5], %s781
          %s783 = sand.u32 %s211, 1
          %s784 = smul.addr %s783, 2
          %s785 = scalar_lea.vmem [#allocation14], %s784
          %787 = dma.done %s782, 32
        $region84: #{tpu_custom_call.1} parent=79 // pred_fallthru
          _
      $region80: #{tpu_custom_call.1} parent=5 // pred_fallthru
        _
    $region6: #{tpu_custom_call.1} parent=1 // loop_footer
      %s29 = sadd.s32 1, %s25
    $region7: #{tpu_custom_call.1} parent=1 // loop_footer_branch
      %24 = sbr.rel target = $region3
    $region8: #{tpu_custom_call.1} parent=1 // loop_exit
      _
    %788 = vsyncpa [#allocation4], 1
    %s789 = scalar_lea.sflag [#allocation4], 1
    %790 = vsyncpa %s789, 1
    %791 = vsyncpa [#allocation7], 1
    %s792 = scalar_lea.sflag [#allocation7], 1
    %793 = vsyncpa %s792, 1
    %794 = vsyncpa [#allocation10], 1
    %s795 = scalar_lea.sflag [#allocation10], 1
    %796 = vsyncpa %s795, 1
    %797 = vsyncpa [#allocation13], 1
    %s798 = scalar_lea.sflag [#allocation13], 1
    %799 = vsyncpa %s798, 1
    %800 = vsyncpa [#allocation5], 1
    %s801 = scalar_lea.sflag [#allocation5], 1
    %802 = vsyncpa %s801, 1

</llo_original>
